<compile_context>
chip_gen: v7x
topology: tpu7x:2x2x1
jax: 0.10.0
libtpu: 0.0.40
codegen_flags: <defaults>
</compile_context>

<pallas_src>
import functools

import jax
import jax.numpy as jnp
from jax.experimental import pallas as pl
from jax.experimental.pallas import tpu as pltpu


_ROWS_PER_GROUP = 8  # image rows packed per lane group (8*W lanes per packed row)


def _conv_relu_kernel(w_ref, b_ref, x_ref, o_ref, *, K, W):
    """One block of packed output rows.

    w_ref: (K*K,) f32 SMEM  - conv kernel, row-major flattened.
    b_ref: (1,)   f32 SMEM  - bias.
    x_ref: (Rt, 2*8*W) f32 VMEM - packed row p holds image rows [8p, 8p+16)
           of its image, flattened row-major along lanes (second half overlaps
           the next packed row / zero padding).
    o_ref: (Rt, 8*W)   f32 VMEM - packed row p holds the (pre-crop) conv+ReLU
           output for image rows [8p, 8p+8), flattened along lanes.
    """
    g_lanes = o_ref.shape[-1]  # 8 * W (128 for W=16): lane-dense operand width

    # Bias-initialized accumulator -> no separate bias-add pass.
    acc = jnp.full(o_ref.shape, b_ref[0], dtype=jnp.float32)

    # Fully unrolled K*K taps.  Each tap: a static lane-offset window load off
    # the Ref + one scalar-weight MAC over a full-width slab.  The offset loads
    # lower to cheap lane shifts (XLU) that co-issue with the VPU MACs; no
    # (8,128)-misaligned value copies of the whole block are materialized.
    for ki in range(K):
        for kj in range(K):
            s = ki * W + kj
            win = x_ref[:, s:s + g_lanes].astype(jnp.float32)
            acc = acc + win * w_ref[ki * K + kj]

    # Full-width (multiple-of-128 lanes when 8*W % 128 == 0) unmasked store;
    # the valid (Hout, Wout) region is cropped outside the kernel.
    o_ref[...] = jnp.maximum(acc, 0.0).astype(o_ref.dtype)


def conv2d_relu_pallas(x, w, b, *, block_rows_cap=1024):
    """x: (B, 1, H, W), w: (1, 1, K, K), b: (1,) -> (B, 1, H-K+1, W-K+1)."""
    B, C, H, W = x.shape
    assert C == 1, "learn_kernel_model uses a single input channel"
    assert w.shape[0] == 1 and w.shape[1] == 1, "expected single in/out channel"
    assert w.shape[-2] == w.shape[-1], "expected square kernel"
    K = w.shape[-1]
    assert K <= H and K <= W, "kernel larger than input"
    RPG = _ROWS_PER_GROUP
    # Each packed input window spans 2 row-groups (16 rows); enough for K<=8.
    # TODO(synk): widen the window to 3 groups for very large K.
    assert (K - 1) * (W + 1) <= RPG * W and K <= RPG + 1, "K too large for 2-group window"

    Hout, Wout = H - K + 1, W - K + 1
    G = pl.cdiv(H, RPG)          # row-groups per image
    Hp = G * RPG                 # rows padded to whole groups
    g_lanes = RPG * W            # lanes per packed output row (128 for W=16)
    R = B * G                    # total packed output rows

    # ---- wrapper-side layout plumbing (all plain XLA, outside the kernel) ----
    xf = x.reshape(B, H, W).astype(jnp.float32)      # explicit f32 compute dtype
    # Pad rows to whole groups + one extra zero group so the last window can
    # read past the image bottom (those taps only feed discarded output rows).
    xf = jnp.pad(xf, ((0, 0), (0, Hp + RPG - H), (0, 0)))
    grp = xf.reshape(B, G + 1, g_lanes)
    # Overlapped windows: packed input row (b, g) = image rows [8g, 8g+16) flat.
    win = jnp.concatenate([grp[:, :G, :], grp[:, 1:, :]], axis=-1)  # (B, G, 2*8W)
    win = win.reshape(R, 2 * g_lanes)

    w_flat = w.reshape(K * K).astype(jnp.float32)    # 1-D SMEM: no (8,128) padding
    b1 = b.reshape(1).astype(jnp.float32)

    # ---- VMEM-aware row tile + parallel grid (v7x: 2 TensorCores) ----
    # Live bytes per packed row ~ (window + output + acc) * double-buffering.
    bytes_per_row = (2 * g_lanes + 2 * g_lanes) * 4 * 2
    rt = max(8, min(block_rows_cap, (8 << 20) // max(1, bytes_per_row)))
    rt = (rt // 8) * 8                               # (8,128) sublane rule
    if R <= rt or R <= 8:
        rt = R                                       # single block == full dim: OK
    num_blocks = pl.cdiv(R, rt)

    kernel = functools.partial(_conv_relu_kernel, K=K, W=W)

    out_packed = pl.pallas_call(
        kernel,
        out_shape=jax.ShapeDtypeStruct((R, g_lanes), x.dtype),
        grid=(num_blocks,),
        in_specs=[
            pl.BlockSpec(memory_space=pltpu.MemorySpace.SMEM),   # weights (K*K,)
            pl.BlockSpec(memory_space=pltpu.MemorySpace.SMEM),   # bias (1,)
            pl.BlockSpec((rt, 2 * g_lanes), lambda i: (i, 0),
                         memory_space=pltpu.MemorySpace.VMEM),   # packed input
        ],
        out_specs=pl.BlockSpec((rt, g_lanes), lambda i: (i, 0),
                               memory_space=pltpu.MemorySpace.VMEM),
        compiler_params=pltpu.CompilerParams(
            dimension_semantics=("parallel",)),
        cost_estimate=pl.CostEstimate(
            flops=2 * B * Hout * Wout * K * K,
            transcendentals=0,
            bytes_accessed=(R * 3 * g_lanes + K * K + 1) * 4,
        ),
    )(w_flat, b1, win)

    # Unpack: (R, 8W) -> (B, Hp, W), crop the valid region, restore channel dim.
    out = out_packed.reshape(B, Hp, W)[:, :Hout, :Wout]
    return out.reshape(B, 1, Hout, Wout)


def _reference(x, w, b):
    out = jax.lax.conv_general_dilated(
        x, w, window_strides=(1, 1), padding="VALID",
        dimension_numbers=("NCHW", "OIHW", "NCHW"))
    out = out + b.reshape(1, 1, 1, 1)
    return jnp.maximum(out, 0.0)


if __name__ == "__main__":
    # Small deterministic setup consistent with the module: batch=2, 1 channel,
    # 16x16 spatial, kernel_size=3.
    B, H, W, K = 2, 16, 16, 3

    key = jax.random.PRNGKey(0)
    kx, kw, kb = jax.random.split(key, 3)

    x = jax.random.normal(kx, (B, 1, H, W), dtype=jnp.float32)

    # Deterministic Conv2d parameter init (PyTorch-style uniform(-1/sqrt(fan_in), +)).
    fan_in = 1 * K * K
    bound = 1.0 / jnp.sqrt(jnp.float32(fan_in))
    w = jax.random.uniform(kw, (1, 1, K, K), jnp.float32, -bound, bound)
    b = jax.random.uniform(kb, (1,), jnp.float32, -bound, bound)

    out = conv2d_relu_pallas(x, w, b)
    out = jax.block_until_ready(out)

    ref = _reference(x, w, b)
    assert out.shape == (B, 1, H - K + 1, W - K + 1)
    assert jnp.allclose(out, ref, atol=1e-5, rtol=1e-5), "mismatch vs reference"

    print("KERNEL_OK")
</pallas_src>

<mosaic_0001>
module attributes {stable_mosaic.version = 11 : i64} {
  func.func @_conv_relu_kernel(%arg0: i32, %arg1: memref<9xf32, #tpu.memory_space<smem>>, %arg2: memref<1xf32, #tpu.memory_space<smem>>, %arg3: memref<4x256xf32, #tpu.memory_space<vmem>>, %arg4: memref<4x128xf32, #tpu.memory_space<vmem>>) attributes {dimension_semantics = [#tpu.dimension_semantics<parallel>], iteration_bounds = array<i64: 1>, scalar_prefetch = 0 : i64, scratch_operands = 0 : i64, tpu.core_type = #tpu.core_type<tc>, window_params = [{transform_indices = @transform_0, window_bounds = array<i64: 9>}, {transform_indices = @transform_1, window_bounds = array<i64: 1>}, {transform_indices = @transform_2, window_bounds = array<i64: 4, 256>}, {transform_indices = @transform_3, window_bounds = array<i64: 4, 128>}]} {
    %c0 = arith.constant 0 : index
    %0 = memref.load %arg2[%c0] : memref<1xf32, #tpu.memory_space<smem>>
    %1 = vector.broadcast %0 : f32 to vector<4x128xf32>
    %c0_0 = arith.constant 0 : index
    %c0_1 = arith.constant 0 : index
    %2 = vector.load %arg3[%c0_0, %c0_1] : memref<4x256xf32, #tpu.memory_space<vmem>>, vector<4x128xf32>
    %c0_2 = arith.constant 0 : index
    %3 = memref.load %arg1[%c0_2] : memref<9xf32, #tpu.memory_space<smem>>
    %4 = vector.broadcast %3 : f32 to vector<4x128xf32>
    %5 = arith.mulf %2, %4 : vector<4x128xf32>
    %6 = arith.addf %1, %5 : vector<4x128xf32>
    %c0_3 = arith.constant 0 : index
    %c1 = arith.constant 1 : index
    %7 = vector.load %arg3[%c0_3, %c1] : memref<4x256xf32, #tpu.memory_space<vmem>>, vector<4x128xf32>
    %c1_4 = arith.constant 1 : index
    %8 = memref.load %arg1[%c1_4] : memref<9xf32, #tpu.memory_space<smem>>
    %9 = vector.broadcast %8 : f32 to vector<4x128xf32>
    %10 = arith.mulf %7, %9 : vector<4x128xf32>
    %11 = arith.addf %6, %10 : vector<4x128xf32>
    %c0_5 = arith.constant 0 : index
    %c2 = arith.constant 2 : index
    %12 = vector.load %arg3[%c0_5, %c2] : memref<4x256xf32, #tpu.memory_space<vmem>>, vector<4x128xf32>
    %c2_6 = arith.constant 2 : index
    %13 = memref.load %arg1[%c2_6] : memref<9xf32, #tpu.memory_space<smem>>
    %14 = vector.broadcast %13 : f32 to vector<4x128xf32>
    %15 = arith.mulf %12, %14 : vector<4x128xf32>
    %16 = arith.addf %11, %15 : vector<4x128xf32>
    %c0_7 = arith.constant 0 : index
    %c16 = arith.constant 16 : index
    %17 = vector.load %arg3[%c0_7, %c16] : memref<4x256xf32, #tpu.memory_space<vmem>>, vector<4x128xf32>
    %c3 = arith.constant 3 : index
    %18 = memref.load %arg1[%c3] : memref<9xf32, #tpu.memory_space<smem>>
    %19 = vector.broadcast %18 : f32 to vector<4x128xf32>
    %20 = arith.mulf %17, %19 : vector<4x128xf32>
    %21 = arith.addf %16, %20 : vector<4x128xf32>
    %c0_8 = arith.constant 0 : index
    %c17 = arith.constant 17 : index
    %22 = vector.load %arg3[%c0_8, %c17] : memref<4x256xf32, #tpu.memory_space<vmem>>, vector<4x128xf32>
    %c4 = arith.constant 4 : index
    %23 = memref.load %arg1[%c4] : memref<9xf32, #tpu.memory_space<smem>>
    %24 = vector.broadcast %23 : f32 to vector<4x128xf32>
    %25 = arith.mulf %22, %24 : vector<4x128xf32>
    %26 = arith.addf %21, %25 : vector<4x128xf32>
    %c0_9 = arith.constant 0 : index
    %c18 = arith.constant 18 : index
    %27 = vector.load %arg3[%c0_9, %c18] : memref<4x256xf32, #tpu.memory_space<vmem>>, vector<4x128xf32>
    %c5 = arith.constant 5 : index
    %28 = memref.load %arg1[%c5] : memref<9xf32, #tpu.memory_space<smem>>
    %29 = vector.broadcast %28 : f32 to vector<4x128xf32>
    %30 = arith.mulf %27, %29 : vector<4x128xf32>
    %31 = arith.addf %26, %30 : vector<4x128xf32>
    %c0_10 = arith.constant 0 : index
    %c32 = arith.constant 32 : index
    %32 = vector.load %arg3[%c0_10, %c32] : memref<4x256xf32, #tpu.memory_space<vmem>>, vector<4x128xf32>
    %c6 = arith.constant 6 : index
    %33 = memref.load %arg1[%c6] : memref<9xf32, #tpu.memory_space<smem>>
    %34 = vector.broadcast %33 : f32 to vector<4x128xf32>
    %35 = arith.mulf %32, %34 : vector<4x128xf32>
    %36 = arith.addf %31, %35 : vector<4x128xf32>
    %c0_11 = arith.constant 0 : index
    %c33 = arith.constant 33 : index
    %37 = vector.load %arg3[%c0_11, %c33] : memref<4x256xf32, #tpu.memory_space<vmem>>, vector<4x128xf32>
    %c7 = arith.constant 7 : index
    %38 = memref.load %arg1[%c7] : memref<9xf32, #tpu.memory_space<smem>>
    %39 = vector.broadcast %38 : f32 to vector<4x128xf32>
    %40 = arith.mulf %37, %39 : vector<4x128xf32>
    %41 = arith.addf %36, %40 : vector<4x128xf32>
    %c0_12 = arith.constant 0 : index
    %c34 = arith.constant 34 : index
    %42 = vector.load %arg3[%c0_12, %c34] : memref<4x256xf32, #tpu.memory_space<vmem>>, vector<4x128xf32>
    %c8 = arith.constant 8 : index
    %43 = memref.load %arg1[%c8] : memref<9xf32, #tpu.memory_space<smem>>
    %44 = vector.broadcast %43 : f32 to vector<4x128xf32>
    %45 = arith.mulf %42, %44 : vector<4x128xf32>
    %46 = arith.addf %41, %45 : vector<4x128xf32>
    %cst = arith.constant 0.000000e+00 : f32
    %47 = vector.broadcast %cst : f32 to vector<4x128xf32>
    %48 = arith.maximumf %46, %47 : vector<4x128xf32>
    %c0_13 = arith.constant 0 : index
    %c0_14 = arith.constant 0 : index
    %49 = vector.load %arg4[%c0_13, %c0_14] : memref<4x128xf32, #tpu.memory_space<vmem>>, vector<4x128xf32>
    tpu.vector_store %arg4[%c0_13, %c0_14], %48 {strides = array<i32>} : memref<4x128xf32, #tpu.memory_space<vmem>>, vector<4x128xf32>,
    return
  }
  func.func @transform_0(%arg0: i32) -> i32 {
    %c0_i32 = arith.constant 0 : i32
    %c0_i32_0 = arith.constant 0 : i32
    return %c0_i32 : i32
  }
  func.func @transform_1(%arg0: i32) -> i32 {
    %c0_i32 = arith.constant 0 : i32
    %c0_i32_0 = arith.constant 0 : i32
    return %c0_i32 : i32
  }
  func.func @transform_2(%arg0: i32) -> (i32, i32) {
    %c0_i32 = arith.constant 0 : i32
    %c0_i32_0 = arith.constant 0 : i32
    return %arg0, %c0_i32 : i32, i32
  }
  func.func @transform_3(%arg0: i32) -> (i32, i32) {
    %c0_i32 = arith.constant 0 : i32
    %c0_i32_0 = arith.constant 0 : i32
    return %arg0, %c0_i32 : i32, i32
  }
}

</mosaic_0001>

<llo_original>
// kernel: tpu_custom_call.1
$region0: #{tpu_custom_call.1}
  #allocation0 [shape = 'u32[]', space=smem, size = 0x4, offset = 0x4, fixed_abs, tag = 'smem constant byte address 0x4 - core index']
  #allocation1 [shape = 'u32[144,128]{1,0:T(1,128)}', space=vmem, size = 0x12000, scoped, tag = 'internal scratch']
  #allocation2 [shape = 'f32[1]{0:T(128)S(6)}', space=smem, size = 0x200, scoped, tag = 'scoped memory for tpu_custom_call.1']
  %s0 = inlined_call_operand.vmem [shape: f32[9], index: 0, kind: input, shape index: {}]
  %s1 = inlined_call_operand.<no memory space> [shape: f32[1], index: 1, kind: input, shape index: {}]
  %s2 = inlined_call_operand.hbm [shape: f32[4,256], index: 2, kind: input, shape index: {}]
  %s3 = inlined_call_operand.hbm [shape: f32[4,128], index: 3, kind: output, shape index: {}]
  %s4 = sld [smem:[#allocation0]]
  $region30: #{tpu_custom_call.1} parent=0
    _
  %s6 = ssub.s32 1, %s4
  %s7 = scalar_select 0, %s6, %s4
  %8 = sst [smem:[#allocation2]] %s1
  $region1: #{tpu_custom_call.1} parent=0
    #allocation3 [shape = 'u8[512]{0}', space=smem, size = 0x200, scoped, tag = 'input window, operand 0, single buffered']
    #allocation4 [shape = 's32[1]{0}', space=sflag, size = 0x4, scoped, tag = 'scoped memory for tpu_custom_call.1']
    #allocation5 [shape = 's32[1]{0}', space=sflag, size = 0x4, scoped, tag = 'scoped memory for tpu_custom_call.1']
    #allocation6 [shape = 's32[1]{0}', space=sflag, size = 0x4, scoped, tag = 'scoped memory for tpu_custom_call.1']
    #allocation7 [shape = 'u8[4096]{0}', space=vmem, size = 0x1000, scoped, tag = 'input window, operand 2, single buffered']
    #allocation8 [shape = 'u8[2048]{0}', space=vmem, size = 0x800, scoped, tag = 'output window, operand 0, single buffered']
    %9 = vsyncpa [#allocation6], 0
    %10 = vsyncpa [#allocation4], 0
    %11 = vsyncpa [#allocation5], 0
    // Predicated region
    $region2: #{tpu_custom_call.1} parent=1 // pred_check
      _
    $region3: #{tpu_custom_call.1} parent=1 // pred_check_branch
      %13 = sbr.rel (0) target = $region5
    $region4: #{tpu_custom_call.1} parent=1 // pred_region
      %s15 = ssub.s32 16, 16
      %16 = vsyncadd [#allocation6], %s15
      %s18 = sshll.u32 %s0, 4
      %s19 = int_to_ptr.vmem [resolvable:$true] %s18
      %21 = dma.vmem_to_smem %s19, 16, [#allocation3], [#allocation6]
    $region5: #{tpu_custom_call.1} parent=1 // pred_fallthru
      _
    // Predicated region
    $region6: #{tpu_custom_call.1} parent=1 // pred_check
      _
    $region7: #{tpu_custom_call.1} parent=1 // pred_check_branch
      %23 = sbr.rel (0) target = $region9
    $region8: #{tpu_custom_call.1} parent=1 // pred_region
      _
    $region9: #{tpu_custom_call.1} parent=1 // pred_fallthru
      _
    // Predicated region
    $region10: #{tpu_custom_call.1} parent=1 // pred_check
      _
    $region11: #{tpu_custom_call.1} parent=1 // pred_check_branch
      %25 = sbr.rel (0) target = $region13
    $region12: #{tpu_custom_call.1} parent=1 // pred_region
      %s27 = ssub.s32 128, 128
      %28 = vsyncadd [#allocation4], %s27
      %s30 = sshll.u32 [#allocation7], 4
      %s31 = int_to_ptr.vmem [resolvable:$true] %s30
      %33 = dma.hbm_to_vmem [thread:$0]  %s2, 128, %s31, [#allocation4]
    $region13: #{tpu_custom_call.1} parent=1 // pred_fallthru
      _
    // Predicated region
    $region14: #{tpu_custom_call.1} parent=1 // pred_check
      _
    $region15: #{tpu_custom_call.1} parent=1 // pred_check_branch
      %35 = sbr.rel (0) target = $region17
    $region16: #{tpu_custom_call.1} parent=1 // pred_region
      %36 = dma.done [#allocation6], 16
    $region17: #{tpu_custom_call.1} parent=1 // pred_fallthru
      _
    // Predicated region
    $region18: #{tpu_custom_call.1} parent=1 // pred_check
      _
    $region19: #{tpu_custom_call.1} parent=1 // pred_check_branch
      %38 = sbr.rel (0) target = $region21
    $region20: #{tpu_custom_call.1} parent=1 // pred_region
      %39 = dma.done [#allocation4], 128
    $region21: #{tpu_custom_call.1} parent=1 // pred_fallthru
      _
    %40 = sfence
    %s41 = sld [smem:[#allocation2]]
    %v42 = vstv %s41
    %v43 = vld [vmem:[#allocation7] sm:$0xf]
    %s44 = sld [smem:[#allocation3]]
    %v45 = vstv %s44
    %v46 = vmul.f32 %v43, %v45
    %v47 = vadd.f32 %v42, %v46
    %v48 = vld [vmem:[#allocation7] sm:$0xff]
    %s49 = sld [smem:[#allocation3 + $0x1]]
    %v50 = vstv %s49
    %v51 = vmul.f32 %v48, %v50
    %53 = vrot.lane.b32.xlu0 %v51, 127
    %v54 = vpop.permute.xlu0 %53
    %v55 = vrot.slane %v54, 4
    %vm56 = vcmask 1039360
    %v57 = vsel %vm56, %v54, %v55
    %v59 = vadd.f32 %v47, %v57
    %s60 = sld [smem:[#allocation3 + $0x2]]
    %v61 = vstv %s60
    %v62 = vmul.f32 %v48, %v61
    %64 = vrot.lane.b32.xlu0 %v62, 126
    %v65 = vpop.permute.xlu0 %64
    %v66 = vrot.slane %v65, 4
    %vm67 = vcmask 1031168
    %v68 = vsel %vm67, %v65, %v66
    %v70 = vadd.f32 %v59, %v68
    %s71 = sld [smem:[#allocation3 + $0x3]]
    %v72 = vstv %s71
    %v73 = vmul.f32 %v48, %v72
    %75 = vrot.lane.b32.xlu0 %v73, 112
    %v76 = vpop.permute.xlu0 %75
    %v77 = vrot.slane %v76, 4
    %vm78 = vcmask 916480
    %v79 = vsel %vm78, %v76, %v77
    %v81 = vadd.f32 %v70, %v79
    %s82 = sld [smem:[#allocation3 + $0x4]]
    %v83 = vstv %s82
    %v84 = vmul.f32 %v48, %v83
    %86 = vrot.lane.b32.xlu0 %v84, 111
    %v87 = vpop.permute.xlu0 %86
    %v88 = vrot.slane %v87, 4
    %vm89 = vcmask 908288
    %v90 = vsel %vm89, %v87, %v88
    %v92 = vadd.f32 %v81, %v90
    %s93 = sld [smem:[#allocation3 + $0x5]]
    %v94 = vstv %s93
    %v95 = vmul.f32 %v48, %v94
    %97 = vrot.lane.b32.xlu0 %v95, 110
    %v98 = vpop.permute.xlu0 %97
    %v99 = vrot.slane %v98, 4
    %vm100 = vcmask 900096
    %v101 = vsel %vm100, %v98, %v99
    %v103 = vadd.f32 %v92, %v101
    %s104 = sld [smem:[#allocation3 + $0x6]]
    %v105 = vstv %s104
    %v106 = vmul.f32 %v48, %v105
    %108 = vrot.lane.b32.xlu0 %v106, 96
    %v109 = vpop.permute.xlu0 %108
    %v110 = vrot.slane %v109, 4
    %vm111 = vcmask 785408
    %v112 = vsel %vm111, %v109, %v110
    %v114 = vadd.f32 %v103, %v112
    %s115 = sld [smem:[#allocation3 + $0x7]]
    %v116 = vstv %s115
    %v117 = vmul.f32 %v48, %v116
    %119 = vrot.lane.b32.xlu0 %v117, 95
    %v120 = vpop.permute.xlu0 %119
    %v121 = vrot.slane %v120, 4
    %vm122 = vcmask 777216
    %v123 = vsel %vm122, %v120, %v121
    %v125 = vadd.f32 %v114, %v123
    %s126 = sld [smem:[#allocation3 + $0x8]]
    %v127 = vstv %s126
    %v128 = vmul.f32 %v48, %v127
    %130 = vrot.lane.b32.xlu0 %v128, 94
    %v131 = vpop.permute.xlu0 %130
    %v132 = vrot.slane %v131, 4
    %vm133 = vcmask 769024
    %v134 = vsel %vm133, %v131, %v132
    %v136 = vadd.f32 %v125, %v134
    %v137 = vmax.f32 %v136, 0.0
    %138 = vst [vmem:[#allocation8] sm:$0xf] %v137
    // Predicated region
    $region22: #{tpu_custom_call.1} parent=1 // pred_check
      _
    $region23: #{tpu_custom_call.1} parent=1 // pred_check_branch
      %140 = sbr.rel (0) target = $region25
    $region24: #{tpu_custom_call.1} parent=1 // pred_region
      %s142 = ssub.s32 64, 64
      %143 = vsyncadd [#allocation5], %s142
      %s145 = sshll.u32 [#allocation8], 4
      %s146 = int_to_ptr.vmem [resolvable:$true] %s145
      %148 = dma.vmem_to_hbm [thread:$0]  %s146, 64, %s3, [#allocation5]
    $region25: #{tpu_custom_call.1} parent=1 // pred_fallthru
      _
    // Predicated region
    $region26: #{tpu_custom_call.1} parent=1 // pred_check
      _
    $region27: #{tpu_custom_call.1} parent=1 // pred_check_branch
      %150 = sbr.rel (0) target = $region29
    $region28: #{tpu_custom_call.1} parent=1 // pred_region
      %151 = dma.done [#allocation5], 64
    $region29: #{tpu_custom_call.1} parent=1 // pred_fallthru
      _
    %152 = vsyncpa [#allocation4], 1
    %153 = vsyncpa [#allocation5], 1
    %154 = vsyncpa [#allocation6], 1

</llo_original>
